<compile_context>
chip_gen: v6e
topology: v6e:2x2x1
jax: 0.10.0
libtpu: 0.0.40
codegen_flags: <defaults>
</compile_context>

<pallas_src>
import jax
import jax.numpy as jnp
from jax.experimental import pallas as pl
from jax.experimental.pallas import tpu as pltpu


def _chunk_plan(channel_counts, upscale_factor):
    """Static plan mapping pixel-shuffle groups back to per-signal channel slices.

    Returns a list of (out_lo, out_hi, srcs) where srcs is an r-tuple of
    (signal_index, row_offset): group u of output channels [out_lo, out_hi)
    comes from signals[signal_index][row_offset : row_offset + (out_hi-out_lo)].
    """
    total_c = sum(channel_counts)
    r = upscale_factor
    c_out = total_c // r
    starts = []
    acc = 0
    for c in channel_counts:
        starts.append(acc)
        acc += c
    # Chunk boundaries in output-channel space: wherever any group's source
    # range crosses a signal boundary.
    bounds = {0, c_out}
    for u in range(r):
        for s in starts[1:]:
            if u * c_out < s < (u + 1) * c_out:
                bounds.add(s - u * c_out)
    bounds = sorted(bounds)
    chunks = []
    for clo, chi in zip(bounds[:-1], bounds[1:]):
        srcs = []
        for u in range(r):
            g = u * c_out + clo  # concatenated-channel index of this chunk/group
            for sidx, (s0, cs) in enumerate(zip(starts, channel_counts)):
                if s0 <= g < s0 + cs:
                    srcs.append((sidx, g - s0))
                    break
        chunks.append((clo, chi, tuple(srcs)))
    return chunks


def _make_kernel(chunks, upscale_factor):
    r = upscale_factor

    def kernel(*refs):
        sig_refs = refs[:-1]
        out_ref = refs[-1]
        tt = sig_refs[0].shape[-1]  # time tile width
        for clo, chi, srcs in chunks:
            nrows = chi - clo
            # One (nrows, tt) slab per pixel-shuffle group, sliced straight out
            # of the signal refs (no channel-axis concat of all inputs).
            parts = [sig_refs[sidx][slo:slo + nrows, :] for sidx, slo in srcs]
            # Minor-axis stack builds (nrows, tt, r) directly (no major-axis
            # stack + 3-D transpose); the merging reshape yields
            # out[c, t*r + u] = parts[u][c, t].  Dtypes are equal by
            # construction, so no astype on the store.
            out_ref[clo:chi, :] = jnp.stack(parts, axis=-1).reshape(nrows, tt * r)

    return kernel


def _vmem_limit_bytes():
    """Scoped-VMEM limit derived from the actual part (fallback: 32 MiB)."""
    try:
        cap = pltpu.get_tpu_info().vmem_capacity_bytes
    except Exception:
        return 32 * 1024 * 1024
    # ~3/4 of physical VMEM, capped at 64 MiB: ~48 MiB on v7x (64 MiB parts),
    # 64 MiB on v5e/v6e (128 MiB parts).
    return int(max(32 * 1024 * 1024, min(64 * 1024 * 1024, (cap * 3) // 4)))


def _pick_tile_t(T, total_c, dsize, vmem_budget_bytes, max_tile_cols=1024):
    """Lane-dense (multiple-of-128) time tile: VMEM-bounded and pipeline-friendly."""
    if T <= 256:
        return T
    # Per time column per step: 2x-buffered inputs + 2x-buffered output
    # (r*tile_t wide but c_out tall == total_c*dsize) + per-chunk relayout
    # temporaries and slack -> ~9x total_c*dsize.
    per_col = 9 * total_c * dsize
    vmem_tile = max(128, (vmem_budget_bytes // per_col) // 128 * 128)
    # Keep >= ~4 grid steps along T so the DMA pipeline overlaps and v7x has
    # enough parallel iterations to use both TensorCores.
    pipeline_tile = max(128, (T // 4) // 128 * 128)
    cap = min(vmem_tile, max_tile_cols, pipeline_tile)
    if cap >= T:
        return T
    t = cap
    while t >= 128:              # prefer a divisor of T (avoids ragged last block)
        if T % t == 0:
            return t
        t -= 128
    return cap                   # ragged last block is still handled (masked stores)


def sp_comb_module(signals, upscale_factor: int, tile_t=None):
    """JAX/Pallas equivalent of SpCombModule.forward(signals).

    signals: list of [B, C_i, T] arrays (same B, T, dtype).
    returns: [B, sum(C_i) // upscale_factor, upscale_factor * T]
    """
    signals = list(signals)
    B, _, T = signals[0].shape
    dtype = signals[0].dtype
    for s in signals:
        assert s.shape[0] == B and s.shape[2] == T, "signals must share batch/time dims"
        assert s.dtype == dtype, "signals must share dtype"
    channel_counts = [s.shape[1] for s in signals]
    total_c = sum(channel_counts)
    r = upscale_factor
    assert total_c % r == 0, "upscale_factor must divide the concatenated channel count"
    c_out = total_c // r
    dsize = jnp.dtype(dtype).itemsize

    vmem_limit = _vmem_limit_bytes()
    if tile_t is None:
        tile_t = _pick_tile_t(T, total_c, dsize, vmem_budget_bytes=vmem_limit // 3)
    tile_t = min(tile_t, T)
    assert tile_t == T or tile_t % 128 == 0, "time tile must be a multiple of 128 (or full T)"
    grid_t = pl.cdiv(T, tile_t)

    chunks = _chunk_plan(channel_counts, r)
    kernel = _make_kernel(chunks, r)

    # Note: for many-signal inputs on v6e, pipeline_mode=pl.Buffered(3) on the
    # per-signal in_specs can hide DMA-issue latency; left at the default
    # double-buffering here for portability.
    in_specs = [
        pl.BlockSpec((pl.Squeezed(), c, tile_t), lambda b, t: (b, 0, t))
        for c in channel_counts
    ]
    out_spec = pl.BlockSpec((pl.Squeezed(), c_out, r * tile_t), lambda b, t: (b, 0, t))

    cost = pl.CostEstimate(
        flops=0,
        transcendentals=0,
        bytes_accessed=2 * B * total_c * T * dsize,  # read everything once, write once
    )

    return pl.pallas_call(
        kernel,
        out_shape=jax.ShapeDtypeStruct((B, c_out, r * T), dtype),
        grid_spec=pl.GridSpec(
            grid=(B, grid_t),
            in_specs=in_specs,
            out_specs=out_spec,
        ),
        compiler_params=pltpu.CompilerParams(
            dimension_semantics=("parallel", "parallel"),
            vmem_limit_bytes=vmem_limit,
        ),
        cost_estimate=cost,
    )(*signals)


def _reference(signals, upscale_factor: int):
    """Pure-JAX reference mirroring the PyTorch module, for validation."""
    full = jnp.concatenate(signals, axis=1)               # [B, C*r, T]
    B, cr, T = full.shape
    c_out = cr // upscale_factor
    x = full.reshape(B, upscale_factor, c_out, T)
    x = jnp.transpose(x, (0, 2, 3, 1))                    # [B, C_out, T, r]
    return x.reshape(B, c_out, upscale_factor * T)


if __name__ == "__main__":
    key = jax.random.PRNGKey(0)
    k1, k2, k3, k4, k5 = jax.random.split(key, 5)

    # SpCombModule has no learnable parameters (PixelShuffle1D is a pure
    # permutation), so nothing to initialize beyond the inputs.

    # Test 1: canonical use (two equal-width signals), tiny shapes.
    B, C, T, r = 2, 4, 16, 2
    low_pass_signal = jax.random.normal(k1, (B, C, T), dtype=jnp.float32)
    high_pass_signal = jax.random.normal(k2, (B, C, T), dtype=jnp.float32)
    out = jax.block_until_ready(sp_comb_module([low_pass_signal, high_pass_signal], r))
    expected = _reference([low_pass_signal, high_pass_signal], r)
    assert out.shape == (B, (2 * C) // r, r * T)
    assert jnp.array_equal(out, expected), "Pallas output mismatch vs reference (test 1)"

    # Test 2: exercises time tiling (grid over T) and pixel-shuffle groups that
    # span signal boundaries (unequal channel counts).
    B2, T2, r2 = 2, 256, 2
    s0 = jax.random.normal(k3, (B2, 3, T2), dtype=jnp.float32)
    s1 = jax.random.normal(k4, (B2, 5, T2), dtype=jnp.float32)
    out2 = jax.block_until_ready(sp_comb_module([s0, s1], r2, tile_t=128))
    expected2 = _reference([s0, s1], r2)
    assert out2.shape == (B2, (3 + 5) // r2, r2 * T2)
    assert jnp.array_equal(out2, expected2), "Pallas output mismatch vs reference (test 2)"

    # Test 3: r > 2 (four signals interleaved 4-way in time).
    B3, C3, T3, r3 = 2, 2, 16, 4
    sigs3 = [jax.random.normal(k, (B3, C3, T3), dtype=jnp.float32)
             for k in jax.random.split(k5, 4)]
    out3 = jax.block_until_ready(sp_comb_module(sigs3, r3))
    expected3 = _reference(sigs3, r3)
    assert out3.shape == (B3, (4 * C3) // r3, r3 * T3)
    assert jnp.array_equal(out3, expected3), "Pallas output mismatch vs reference (test 3)"

    print("KERNEL_OK")
</pallas_src>

<mosaic_0001>
module attributes {stable_mosaic.version = 11 : i64} {
  func.func @kernel(%arg0: i32, %arg1: i32, %arg2: memref<1x4x16xf32, #tpu.memory_space<vmem>>, %arg3: memref<1x4x16xf32, #tpu.memory_space<vmem>>, %arg4: memref<1x4x32xf32, #tpu.memory_space<vmem>>) attributes {dimension_semantics = [#tpu.dimension_semantics<parallel>, #tpu.dimension_semantics<parallel>], iteration_bounds = array<i64: 2, 1>, scalar_prefetch = 0 : i64, scratch_operands = 0 : i64, tpu.core_type = #tpu.core_type<tc>, window_params = [{transform_indices = @transform_0, window_bounds = array<i64: 1, 4, 16>}, {transform_indices = @transform_1, window_bounds = array<i64: 1, 4, 16>}, {transform_indices = @transform_2, window_bounds = array<i64: 1, 4, 32>}]} {
    %c0 = arith.constant 0 : index
    %c0_0 = arith.constant 0 : index
    %c0_1 = arith.constant 0 : index
    %0 = vector.load %arg2[%c0, %c0_0, %c0_1] : memref<1x4x16xf32, #tpu.memory_space<vmem>>, vector<1x4x16xf32>
    %1 = vector.shape_cast %0 : vector<1x4x16xf32> to vector<4x16xf32>
    %c0_2 = arith.constant 0 : index
    %c0_3 = arith.constant 0 : index
    %c0_4 = arith.constant 0 : index
    %2 = vector.load %arg3[%c0_2, %c0_3, %c0_4] : memref<1x4x16xf32, #tpu.memory_space<vmem>>, vector<1x4x16xf32>
    %3 = vector.shape_cast %2 : vector<1x4x16xf32> to vector<4x16xf32>
    %4 = vector.shape_cast %1 : vector<4x16xf32> to vector<4x16x1xf32>
    %5 = vector.shape_cast %3 : vector<4x16xf32> to vector<4x16x1xf32>
    %6 = tpu.concatenate %4, %5 in 2 : vector<4x16x1xf32>, vector<4x16x1xf32> -> vector<4x16x2xf32>
    %7 = vector.shape_cast %6 : vector<4x16x2xf32> to vector<4x32xf32>
    %c0_5 = arith.constant 0 : index
    %c0_6 = arith.constant 0 : index
    %c0_7 = arith.constant 0 : index
    %8 = vector.load %arg4[%c0_5, %c0_6, %c0_7] : memref<1x4x32xf32, #tpu.memory_space<vmem>>, vector<1x4x32xf32>
    %9 = vector.shape_cast %8 : vector<1x4x32xf32> to vector<4x32xf32>
    %10 = vector.shape_cast %7 : vector<4x32xf32> to vector<1x4x32xf32>
    tpu.vector_store %arg4[%c0_5, %c0_6, %c0_7], %10 {strides = array<i32>} : memref<1x4x32xf32, #tpu.memory_space<vmem>>, vector<1x4x32xf32>,
    return
  }
  func.func @transform_0(%arg0: i32, %arg1: i32) -> (i32, i32, i32) {
    %c0_i32 = arith.constant 0 : i32
    %c0_i32_0 = arith.constant 0 : i32
    return %arg0, %c0_i32, %arg1 : i32, i32, i32
  }
  func.func @transform_1(%arg0: i32, %arg1: i32) -> (i32, i32, i32) {
    %c0_i32 = arith.constant 0 : i32
    %c0_i32_0 = arith.constant 0 : i32
    return %arg0, %c0_i32, %arg1 : i32, i32, i32
  }
  func.func @transform_2(%arg0: i32, %arg1: i32) -> (i32, i32, i32) {
    %c0_i32 = arith.constant 0 : i32
    %c0_i32_0 = arith.constant 0 : i32
    return %arg0, %c0_i32, %arg1 : i32, i32, i32
  }
}

</mosaic_0001>

<llo_original>
// kernel: tpu_custom_call.1
$region0: #{tpu_custom_call.1}
  #allocation0 [shape = 'u32[]', space=smem, size = 0x4, offset = 0x4, fixed_abs, tag = 'smem constant byte address 0x4 - core index']
  #allocation1 [shape = 'u32[144,128]{1,0:T(1,128)}', space=vmem, size = 0x12000, scoped, tag = 'internal scratch']
  %s0 = inlined_call_operand.hbm [shape: f32[2,4,16], index: 0, kind: input, shape index: {}]
  %s1 = inlined_call_operand.hbm [shape: f32[2,4,16], index: 1, kind: input, shape index: {}]
  %s2 = inlined_call_operand.hbm [shape: f32[2,4,32], index: 2, kind: output, shape index: {}]
  %s3 = sld [smem:[#allocation0]]
  $region49: #{tpu_custom_call.1} parent=0
    _
  %s5 = ssub.s32 1, %s3
  %s6 = scalar_select 0, %s5, %s3
  $region1: #{tpu_custom_call.1} parent=0
    #allocation2 [shape = 'u8[4096]{0}', space=vmem, size = 0x1000, scoped, tag = 'input window, operand 0']
    #allocation3 [shape = 's32[2]{0}', space=sflag, size = 0x8, scoped, tag = 'scoped memory for tpu_custom_call.1']
    #allocation4 [shape = 's32[2]{0}', space=sflag, size = 0x8, scoped, tag = 'scoped memory for tpu_custom_call.1']
    #allocation5 [shape = 'u8[4096]{0}', space=vmem, size = 0x1000, scoped, tag = 'input window, operand 1']
    #allocation6 [shape = 's32[2]{0}', space=sflag, size = 0x8, scoped, tag = 'scoped memory for tpu_custom_call.1']
    #allocation7 [shape = 'u8[4096]{0}', space=vmem, size = 0x1000, scoped, tag = 'output window, operand 0']
    %7 = vsyncpa [#allocation3], 0
    %s8 = scalar_lea.sflag [#allocation3], 1
    %9 = vsyncpa %s8, 0
    %10 = vsyncpa [#allocation6], 0
    %s11 = scalar_lea.sflag [#allocation6], 1
    %12 = vsyncpa %s11, 0
    %13 = vsyncpa [#allocation4], 0
    %s14 = scalar_lea.sflag [#allocation4], 1
    %15 = vsyncpa %s14, 0
    loop: start=0, step=1, limit=4
    $region2: #{tpu_custom_call.1} parent=1 // loop_pre_header
      _
    $region3: #{tpu_custom_call.1} parent=1 // loop_header
      %s17 = sphi 0, %s21
      %p18 = scmp.ge.s32.totalorder %s17, 4
      %s24 = sphi 0, %s36
      %s25 = sphi 0, %s32
      %s26 = sphi 0, %s24
      %s27 = sphi 0, %s25
      %s28 = sphi 0, %s26
      %s29 = sphi 0, %s27
      %s41 = sphi 0, %s43
      %s44 = sphi 0, %s41
      %s45 = sphi 0, %s44
      %s61 = sphi 0, %s45
      %s69 = sphi 0, %s71
      %s72 = sphi 0, %s69
      %s73 = sphi 0, %s72
      %s89 = sphi 0, %s73
      %s97 = sphi 0, %s99
      %s100 = sphi 0, %s97
      %s101 = sphi 0, %s100
      %s117 = sphi 0, %s101
    $region4: #{tpu_custom_call.1} parent=1 // loop_header_branch
      %20 = sbr.rel (%p18) target = $region8
    $region5: #{tpu_custom_call.1} parent=1 // loop_body
      %s22 = ssub.s32 %s17, 1
      %s23 = ssub.s32 %s17, 2
      %s30 = sadd.s32 1, %s25
      %p31 = scmp.ge.s32.totalorder %s30, 1
      %s32 = scalar_select %p31, 0, %s30
      %s33 = sadd.s32 1, %s24
      %s34 = scalar_select %p31, %s33, %s24
      %p35 = scmp.ge.s32.totalorder %s34, 2
      %s36 = scalar_select %p35, 0, %s34
      %s37 = ssub.s32 %s24, %s36
      %s38 = ssub.s32 %s25, %s32
      %s39 = sor.u32 %s37, %s38
      %p40 = scmp.eq.s32.totalorder %s39, 0
      %s42 = sadd.s32 %s41, 1
      %s43 = scalar_select %p40, %s41, %s42
      %p46 = pneg %p40
      %p47 = scmp.eq.s32.totalorder %s17, 1
      %p48 = por %p46, %p47
      %p49 = scmp.ne.s32.totalorder %s41, %s44
      %p50 = scmp.eq.s32.totalorder %s17, 0
      %p51 = por %p49, %p50
      %p52 = scmp.ne.s32.totalorder %s41, %s44
      %p53 = scmp.eq.s32.totalorder %s22, 1
      %p54 = por %p52, %p53
      %p55 = scmp.ne.s32.totalorder %s44, %s45
      %p56 = scmp.eq.s32.totalorder %s22, 0
      %p57 = por %p55, %p56
      %p58 = scmp.ne.s32.totalorder %s44, %s45
      %p59 = scmp.eq.s32.totalorder %s23, 1
      %p60 = por %p58, %p59
      %p62 = scmp.ne.s32.totalorder %s45, %s61
      %p63 = scmp.eq.s32.totalorder %s23, 0
      %p64 = por %p62, %p63
      %s65 = ssub.s32 %s24, %s36
      %s66 = ssub.s32 %s25, %s32
      %s67 = sor.u32 %s65, %s66
      %p68 = scmp.eq.s32.totalorder %s67, 0
      %s70 = sadd.s32 %s69, 1
      %s71 = scalar_select %p68, %s69, %s70
      %p74 = pneg %p68
      %p75 = scmp.eq.s32.totalorder %s17, 1
      %p76 = por %p74, %p75
      %p77 = scmp.ne.s32.totalorder %s69, %s72
      %p78 = scmp.eq.s32.totalorder %s17, 0
      %p79 = por %p77, %p78
      %p80 = scmp.ne.s32.totalorder %s69, %s72
      %p81 = scmp.eq.s32.totalorder %s22, 1
      %p82 = por %p80, %p81
      %p83 = scmp.ne.s32.totalorder %s72, %s73
      %p84 = scmp.eq.s32.totalorder %s22, 0
      %p85 = por %p83, %p84
      %p86 = scmp.ne.s32.totalorder %s72, %s73
      %p87 = scmp.eq.s32.totalorder %s23, 1
      %p88 = por %p86, %p87
      %p90 = scmp.ne.s32.totalorder %s73, %s89
      %p91 = scmp.eq.s32.totalorder %s23, 0
      %p92 = por %p90, %p91
      %s93 = ssub.s32 %s24, %s36
      %s94 = ssub.s32 %s25, %s32
      %s95 = sor.u32 %s93, %s94
      %p96 = scmp.eq.s32.totalorder %s95, 0
      %s98 = sadd.s32 %s97, 1
      %s99 = scalar_select %p96, %s97, %s98
      %p102 = pneg %p96
      %p103 = scmp.eq.s32.totalorder %s17, 1
      %p104 = por %p102, %p103
      %p105 = scmp.ne.s32.totalorder %s97, %s100
      %p106 = scmp.eq.s32.totalorder %s17, 0
      %p107 = por %p105, %p106
      %p108 = scmp.ne.s32.totalorder %s97, %s100
      %p109 = scmp.eq.s32.totalorder %s22, 1
      %p110 = por %p108, %p109
      %p111 = scmp.ne.s32.totalorder %s100, %s101
      %p112 = scmp.eq.s32.totalorder %s22, 0
      %p113 = por %p111, %p112
      %p114 = scmp.ne.s32.totalorder %s100, %s101
      %p115 = scmp.eq.s32.totalorder %s23, 1
      %p116 = por %p114, %p115
      %p118 = scmp.ne.s32.totalorder %s101, %s117
      %p119 = scmp.eq.s32.totalorder %s23, 0
      %p120 = por %p118, %p119
      %p121 = scmp.le.s32.totalorder 1, %s17
      %p122 = scmp.lt.s32.totalorder %s17, 3
      %p123 = pnand %p121, %p122
      %p124 = pneg %p123
      // Predicated region
      $region9: #{tpu_custom_call.1} parent=5 // pred_check
        _
      $region10: #{tpu_custom_call.1} parent=5 // pred_check_branch
        %126 = sbr.rel (%p123) target = $region12
      $region11: #{tpu_custom_call.1} parent=5 // pred_region
        %s127 = ssub.s32 %s17, 1
      $region12: #{tpu_custom_call.1} parent=5 // pred_fallthru
        _
      %p128 = scmp.lt.s32.totalorder %s17, 2
      // Predicated region
      $region13: #{tpu_custom_call.1} parent=5 // pred_check
        %p129 = pneg %p128
      $region14: #{tpu_custom_call.1} parent=5 // pred_check_branch
        %131 = sbr.rel (%p129) target = $region16
      $region15: #{tpu_custom_call.1} parent=5 // pred_region
        // Predicated region
        $region17: #{tpu_custom_call.1} parent=15 // pred_check
          %p132 = pneg %p51
        $region18: #{tpu_custom_call.1} parent=15 // pred_check_branch
          %134 = sbr.rel (%p132) target = $region20
        $region19: #{tpu_custom_call.1} parent=15 // pred_region
          %s135 = sand.u32 %s41, 1
          %s136 = scalar_lea.sflag [#allocation3], %s135
          %s137 = sand.u32 %s41, 1
          %s138 = smul.addr %s137, 4
          %s139 = scalar_lea.vmem [#allocation2], %s138
          %s141 = ssub.s32 64, 64
          %142 = vsyncadd %s136, %s141
          %s143 = sadd.s32 %s25, %s24
          %s144 = smul.addr %s143, 64
          %s145 = scalar_lea.hbm %s0, %s144
          %s147 = sshll.u32 %s139, 4
          %s148 = int_to_ptr.vmem [resolvable:$true] %s147
          %150 = dma.hbm_to_vmem [thread:$0]  %s145, 64, %s148, %s136
        $region20: #{tpu_custom_call.1} parent=15 // pred_fallthru
          _
        // Predicated region
        $region21: #{tpu_custom_call.1} parent=15 // pred_check
          %p151 = pneg %p79
        $region22: #{tpu_custom_call.1} parent=15 // pred_check_branch
          %153 = sbr.rel (%p151) target = $region24
        $region23: #{tpu_custom_call.1} parent=15 // pred_region
          %s154 = sand.u32 %s69, 1
          %s155 = scalar_lea.sflag [#allocation6], %s154
          %s156 = sand.u32 %s69, 1
          %s157 = smul.addr %s156, 4
          %s158 = scalar_lea.vmem [#allocation5], %s157
          %s160 = ssub.s32 64, 64
          %161 = vsyncadd %s155, %s160
          %s162 = sadd.s32 %s25, %s24
          %s163 = smul.addr %s162, 64
          %s164 = scalar_lea.hbm %s1, %s163
          %s166 = sshll.u32 %s158, 4
          %s167 = int_to_ptr.vmem [resolvable:$true] %s166
          %169 = dma.hbm_to_vmem [thread:$0]  %s164, 64, %s167, %s155
        $region24: #{tpu_custom_call.1} parent=15 // pred_fallthru
          _
      $region16: #{tpu_custom_call.1} parent=5 // pred_fallthru
        _
      %p170 = scmp.le.s32.totalorder 1, %s17
      %p171 = scmp.lt.s32.totalorder %s17, 3
      %p172 = pnand %p170, %p171
      %p173 = pneg %p172
      // Predicated region
      $region25: #{tpu_custom_call.1} parent=5 // pred_check
        _
      $region26: #{tpu_custom_call.1} parent=5 // pred_check_branch
        %175 = sbr.rel (%p172) target = $region28
      $region27: #{tpu_custom_call.1} parent=5 // pred_region
        %s176 = ssub.s32 %s17, 1
        %s177 = sand.u32 %s44, 1
        %s178 = scalar_lea.sflag [#allocation3], %s177
        %s179 = sand.u32 %s44, 1
        %s180 = smul.addr %s179, 4
        %s181 = scalar_lea.vmem [#allocation2], %s180
        // Predicated region
        $region29: #{tpu_custom_call.1} parent=27 // pred_check
          %p182 = pneg %p57
        $region30: #{tpu_custom_call.1} parent=27 // pred_check_branch
          %184 = sbr.rel (%p182) target = $region32
        $region31: #{tpu_custom_call.1} parent=27 // pred_region
          %185 = dma.done %s178, 64
        $region32: #{tpu_custom_call.1} parent=27 // pred_fallthru
          _
        %s186 = sand.u32 %s72, 1
        %s187 = scalar_lea.sflag [#allocation6], %s186
        %s188 = sand.u32 %s72, 1
        %s189 = smul.addr %s188, 4
        %s190 = scalar_lea.vmem [#allocation5], %s189
        // Predicated region
        $region33: #{tpu_custom_call.1} parent=27 // pred_check
          %p191 = pneg %p85
        $region34: #{tpu_custom_call.1} parent=27 // pred_check_branch
          %193 = sbr.rel (%p191) target = $region36
        $region35: #{tpu_custom_call.1} parent=27 // pred_region
          %194 = dma.done %s187, 64
        $region36: #{tpu_custom_call.1} parent=27 // pred_fallthru
          _
        %s195 = sand.u32 %s44, 1
        %s196 = scalar_lea.sflag [#allocation3], %s195
        %s197 = sand.u32 %s44, 1
        %s198 = smul.addr %s197, 4
        %s199 = scalar_lea.vmem [#allocation2], %s198
        %p200 = pneg %p57
        %p201 = pneg %p54
        %s202 = sand.u32 %s72, 1
        %s203 = scalar_lea.sflag [#allocation6], %s202
        %s204 = sand.u32 %s72, 1
        %s205 = smul.addr %s204, 4
        %s206 = scalar_lea.vmem [#allocation5], %s205
        %p207 = pneg %p85
        %p208 = pneg %p82
        %p209 = pneg %p113
        %p210 = pneg %p110
        %s211 = sand.u32 %s100, 1
        %s212 = scalar_lea.sflag [#allocation4], %s211
        %s213 = sand.u32 %s100, 1
        %s214 = smul.addr %s213, 4
        %s215 = scalar_lea.vmem [#allocation7], %s214
        %v216 = vld [vmem:[%s181] sm:$0xf]
        %v217 = vld [vmem:[%s190] sm:$0xf]
        %v218 = vlaneseq
        %v219 = vshrl.u32 %v218, 7
        %v220 = vsub.s32 0, %v219
        %v221 = vrot.slane %v216, %v220
        %223 = vbcast.lane.b32.xlu0 %v221, 256
        %v224 = vpop.permute.xlu0 %223
        %s226 = sor.u32 256, 8
        %227 = vbcast.lane.b32.xlu0 %v221, %s226
        %v228 = vpop.permute.xlu0 %227
        %v229 = vlaneseq
        %v230 = vshrl.u32 %v229, 7
        %v231 = vsub.s32 1, %v230
        %v232 = vrot.slane %v216, %v231
        %234 = vbcast.lane.b32.xlu0 %v232, 256
        %v235 = vpop.permute.xlu0 %234
        %s237 = sor.u32 256, 8
        %238 = vbcast.lane.b32.xlu0 %v232, %s237
        %v239 = vpop.permute.xlu0 %238
        %v240 = vlaneseq
        %v241 = vshrl.u32 %v240, 7
        %v242 = vsub.s32 2, %v241
        %v243 = vrot.slane %v216, %v242
        %245 = vbcast.lane.b32.xlu0 %v243, 256
        %v246 = vpop.permute.xlu0 %245
        %s248 = sor.u32 256, 8
        %249 = vbcast.lane.b32.xlu0 %v243, %s248
        %v250 = vpop.permute.xlu0 %249
        %v251 = vlaneseq
        %v252 = vshrl.u32 %v251, 7
        %v253 = vsub.s32 3, %v252
        %v254 = vrot.slane %v216, %v253
        %256 = vbcast.lane.b32.xlu0 %v254, 256
        %v257 = vpop.permute.xlu0 %256
        %s259 = sor.u32 256, 8
        %260 = vbcast.lane.b32.xlu0 %v254, %s259
        %v261 = vpop.permute.xlu0 %260
        %v262 = vlaneseq
        %v263 = vshrl.u32 %v262, 7
        %v264 = vsub.s32 0, %v263
        %v265 = vrot.slane %v217, %v264
        %267 = vbcast.lane.b32.xlu0 %v265, 256
        %v268 = vpop.permute.xlu0 %267
        %s270 = sor.u32 256, 8
        %271 = vbcast.lane.b32.xlu0 %v265, %s270
        %v272 = vpop.permute.xlu0 %271
        %v273 = vlaneseq
        %v274 = vshrl.u32 %v273, 7
        %v275 = vsub.s32 1, %v274
        %v276 = vrot.slane %v217, %v275
        %278 = vbcast.lane.b32.xlu0 %v276, 256
        %v279 = vpop.permute.xlu0 %278
        %s281 = sor.u32 256, 8
        %282 = vbcast.lane.b32.xlu0 %v276, %s281
        %v283 = vpop.permute.xlu0 %282
        %v284 = vlaneseq
        %v285 = vshrl.u32 %v284, 7
        %v286 = vsub.s32 2, %v285
        %v287 = vrot.slane %v217, %v286
        %289 = vbcast.lane.b32.xlu0 %v287, 256
        %v290 = vpop.permute.xlu0 %289
        %s292 = sor.u32 256, 8
        %293 = vbcast.lane.b32.xlu0 %v287, %s292
        %v294 = vpop.permute.xlu0 %293
        %v295 = vlaneseq
        %v296 = vshrl.u32 %v295, 7
        %v297 = vsub.s32 3, %v296
        %v298 = vrot.slane %v217, %v297
        %300 = vbcast.lane.b32.xlu0 %v298, 256
        %v301 = vpop.permute.xlu0 %300
        %s303 = sor.u32 256, 8
        %304 = vbcast.lane.b32.xlu0 %v298, %s303
        %v305 = vpop.permute.xlu0 %304
        %vm306 = vcmask 7168
        %v307 = vsel %vm306, %v224, %v268
        %v308 = vsel %vm306, %v228, %v272
        %v309 = vsel %vm306, %v235, %v279
        %v310 = vsel %vm306, %v239, %v283
        %v311 = vsel %vm306, %v246, %v290
        %v312 = vsel %vm306, %v250, %v294
        %v313 = vsel %vm306, %v257, %v301
        %v314 = vsel %vm306, %v261, %v305
        %v315 = vcombine.low %v307, %v311
        %v316 = vcombine.high %v307, %v311
        %v318 = vunpack.c.l.s4 1983009808
        %v319 = vunpack.c.0.s8 %v318
        %v320 = vlaneseq
        %v321 = vshrl.u32 %v320, 7
        %v322 = vsub.s32 %v319, %v321
        %v323 = vrot.slane %v315, %v322
        %v325 = vunpack.c.l.s4 1983009808
        %v326 = vunpack.c.0.s8 %v325
        %v327 = vlaneseq
        %v328 = vshrl.u32 %v327, 7
        %v329 = vsub.s32 %v326, %v328
        %v330 = vrot.slane %v316, %v329
        %v331 = vcombine.low %v309, %v313
        %v332 = vcombine.high %v309, %v313
        %v334 = vunpack.c.l.s4 1983009808
        %v335 = vunpack.c.0.s8 %v334
        %v336 = vlaneseq
        %v337 = vshrl.u32 %v336, 7
        %v338 = vsub.s32 %v335, %v337
        %v339 = vrot.slane %v331, %v338
        %v341 = vunpack.c.l.s4 1983009808
        %v342 = vunpack.c.0.s8 %v341
        %v343 = vlaneseq
        %v344 = vshrl.u32 %v343, 7
        %v345 = vsub.s32 %v342, %v344
        %v346 = vrot.slane %v332, %v345
        %v347 = vcombine.low %v323, %v339
        %v348 = vcombine.high %v323, %v339
        %v350 = vunpack.c.l.s4 1934713408
        %v351 = vunpack.c.0.s8 %v350
        %v352 = vlaneseq
        %v353 = vshrl.u32 %v352, 7
        %v354 = vsub.s32 %v351, %v353
        %v355 = vrot.slane %v347, %v354
        %v357 = vunpack.c.l.s4 1934713408
        %v358 = vunpack.c.0.s8 %v357
        %v359 = vlaneseq
        %v360 = vshrl.u32 %v359, 7
        %v361 = vsub.s32 %v358, %v360
        %v362 = vrot.slane %v348, %v361
        %v363 = vcombine.low %v330, %v346
        %v364 = vcombine.high %v330, %v346
        %v366 = vunpack.c.l.s4 1934713408
        %v367 = vunpack.c.0.s8 %v366
        %v368 = vlaneseq
        %v369 = vshrl.u32 %v368, 7
        %v370 = vsub.s32 %v367, %v369
        %v371 = vrot.slane %v363, %v370
        %v373 = vunpack.c.l.s4 1934713408
        %v374 = vunpack.c.0.s8 %v373
        %v375 = vlaneseq
        %v376 = vshrl.u32 %v375, 7
        %v377 = vsub.s32 %v374, %v376
        %v378 = vrot.slane %v364, %v377
        %v379 = vcombine.high %v355, 0.0
        %v380 = vcombine.high %v362, 0.0
        %v381 = vcombine.high %v371, 0.0
        %v382 = vcombine.high %v378, 0.0
        %v383 = vcombine.low %v308, %v312
        %v384 = vcombine.high %v308, %v312
        %v386 = vunpack.c.l.s4 1983009808
        %v387 = vunpack.c.0.s8 %v386
        %v388 = vlaneseq
        %v389 = vshrl.u32 %v388, 7
        %v390 = vsub.s32 %v387, %v389
        %v391 = vrot.slane %v383, %v390
        %v393 = vunpack.c.l.s4 1983009808
        %v394 = vunpack.c.0.s8 %v393
        %v395 = vlaneseq
        %v396 = vshrl.u32 %v395, 7
        %v397 = vsub.s32 %v394, %v396
        %v398 = vrot.slane %v384, %v397
        %v399 = vcombine.low %v310, %v314
        %v400 = vcombine.high %v310, %v314
        %v402 = vunpack.c.l.s4 1983009808
        %v403 = vunpack.c.0.s8 %v402
        %v404 = vlaneseq
        %v405 = vshrl.u32 %v404, 7
        %v406 = vsub.s32 %v403, %v405
        %v407 = vrot.slane %v399, %v406
        %v409 = vunpack.c.l.s4 1983009808
        %v410 = vunpack.c.0.s8 %v409
        %v411 = vlaneseq
        %v412 = vshrl.u32 %v411, 7
        %v413 = vsub.s32 %v410, %v412
        %v414 = vrot.slane %v400, %v413
        %v415 = vcombine.low %v391, %v407
        %v416 = vcombine.high %v391, %v407
        %v418 = vunpack.c.l.s4 1934713408
        %v419 = vunpack.c.0.s8 %v418
        %v420 = vlaneseq
        %v421 = vshrl.u32 %v420, 7
        %v422 = vsub.s32 %v419, %v421
        %v423 = vrot.slane %v415, %v422
        %v425 = vunpack.c.l.s4 1934713408
        %v426 = vunpack.c.0.s8 %v425
        %v427 = vlaneseq
        %v428 = vshrl.u32 %v427, 7
        %v429 = vsub.s32 %v426, %v428
        %v430 = vrot.slane %v416, %v429
        %v431 = vcombine.low %v398, %v414
        %v432 = vcombine.high %v398, %v414
        %v434 = vunpack.c.l.s4 1934713408
        %v435 = vunpack.c.0.s8 %v434
        %v436 = vlaneseq
        %v437 = vshrl.u32 %v436, 7
        %v438 = vsub.s32 %v435, %v437
        %v439 = vrot.slane %v431, %v438
        %v441 = vunpack.c.l.s4 1934713408
        %v442 = vunpack.c.0.s8 %v441
        %v443 = vlaneseq
        %v444 = vshrl.u32 %v443, 7
        %v445 = vsub.s32 %v442, %v444
        %v446 = vrot.slane %v432, %v445
        %v447 = vcombine.high %v423, 0.0
        %v448 = vcombine.high %v430, 0.0
        %v449 = vcombine.high %v439, 0.0
        %v450 = vcombine.high %v446, 0.0
        %452 = vrot.lane.b32.xlu0 %v379, 2
        %v453 = vpop.permute.xlu0 %452
        %456 = vrot.lane.b32.xlu0 %v362, 4
        %v457 = vpop.permute.xlu0 %456
        %460 = vrot.lane.b32.xlu0 %v380, 6
        %v461 = vpop.permute.xlu0 %460
        %464 = vrot.lane.b32.xlu0 %v371, 8
        %v465 = vpop.permute.xlu0 %464
        %468 = vrot.lane.b32.xlu0 %v381, 10
        %v469 = vpop.permute.xlu0 %468
        %472 = vrot.lane.b32.xlu0 %v378, 12
        %v473 = vpop.permute.xlu0 %472
        %476 = vrot.lane.b32.xlu0 %v382, 14
        %v477 = vpop.permute.xlu0 %476
        %480 = vrot.lane.b32.xlu0 %v423, 16
        %v481 = vpop.permute.xlu0 %480
        %484 = vrot.lane.b32.xlu0 %v447, 18
        %v485 = vpop.permute.xlu0 %484
        %488 = vrot.lane.b32.xlu0 %v430, 20
        %v489 = vpop.permute.xlu0 %488
        %492 = vrot.lane.b32.xlu0 %v448, 22
        %v493 = vpop.permute.xlu0 %492
        %496 = vrot.lane.b32.xlu0 %v439, 24
        %v497 = vpop.permute.xlu0 %496
        %500 = vrot.lane.b32.xlu0 %v449, 26
        %v501 = vpop.permute.xlu0 %500
        %504 = vrot.lane.b32.xlu0 %v446, 28
        %v505 = vpop.permute.xlu0 %504
        %508 = vrot.lane.b32.xlu0 %v450, 30
        %v509 = vpop.permute.xlu0 %508
        %vm511 = vcmask 15360
        %v512 = vsel %vm511, %v355, %v453
        %vm513 = vcmask 31744
        %v514 = vsel %vm513, %v512, %v457
        %vm515 = vcmask 48128
        %v516 = vsel %vm515, %v514, %v461
        %vm517 = vcmask 64512
        %v518 = vsel %vm517, %v516, %v465
        %vm519 = vcmask 80896
        %v520 = vsel %vm519, %v518, %v469
        %vm521 = vcmask 97280
        %v522 = vsel %vm521, %v520, %v473
        %vm523 = vcmask 113664
        %v524 = vsel %vm523, %v522, %v477
        %vm525 = vcmask 130048
        %v526 = vsel %vm525, %v524, %v481
        %vm527 = vcmask 146432
        %v528 = vsel %vm527, %v526, %v485
        %vm529 = vcmask 162816
        %v530 = vsel %vm529, %v528, %v489
        %vm531 = vcmask 179200
        %v532 = vsel %vm531, %v530, %v493
        %vm533 = vcmask 195584
        %v534 = vsel %vm533, %v532, %v497
        %vm535 = vcmask 211968
        %v536 = vsel %vm535, %v534, %v501
        %vm537 = vcmask 228352
        %v538 = vsel %vm537, %v536, %v505
        %vm539 = vcmask 244736
        %v540 = vsel %vm539, %v538, %v509
        %vm541 = vcmask 257024
        %542 = vst.msk [vmem:[%s215] sm:$0xf] %vm541, %v540
        %s543 = sand.u32 %s100, 1
        %s544 = scalar_lea.sflag [#allocation4], %s543
        %s545 = sand.u32 %s100, 1
        %s546 = smul.addr %s545, 4
        %s547 = scalar_lea.vmem [#allocation7], %s546
        // Predicated region
        $region37: #{tpu_custom_call.1} parent=27 // pred_check
          %p548 = pneg %p110
        $region38: #{tpu_custom_call.1} parent=27 // pred_check_branch
          %550 = sbr.rel (%p548) target = $region40
        $region39: #{tpu_custom_call.1} parent=27 // pred_region
          %s552 = ssub.s32 64, 64
          %553 = vsyncadd %s544, %s552
          %s554 = sadd.s32 %s27, %s26
          %s555 = smul.addr %s554, 64
          %s556 = scalar_lea.hbm %s2, %s555
          %s558 = sshll.u32 %s547, 4
          %s559 = int_to_ptr.vmem [resolvable:$true] %s558
          %561 = dma.vmem_to_hbm [thread:$0]  %s559, 64, %s556, %s544
        $region40: #{tpu_custom_call.1} parent=27 // pred_fallthru
          _
      $region28: #{tpu_custom_call.1} parent=5 // pred_fallthru
        _
      %p562 = scmp.le.s32.totalorder 2, %s17
      // Predicated region
      $region41: #{tpu_custom_call.1} parent=5 // pred_check
        %p563 = pneg %p562
      $region42: #{tpu_custom_call.1} parent=5 // pred_check_branch
        %565 = sbr.rel (%p563) target = $region44
      $region43: #{tpu_custom_call.1} parent=5 // pred_region
        %s566 = ssub.s32 %s17, 2
        // Predicated region
        $region45: #{tpu_custom_call.1} parent=43 // pred_check
          %p567 = pneg %p116
        $region46: #{tpu_custom_call.1} parent=43 // pred_check_branch
          %569 = sbr.rel (%p567) target = $region48
        $region47: #{tpu_custom_call.1} parent=43 // pred_region
          %s570 = sand.u32 %s101, 1
          %s571 = scalar_lea.sflag [#allocation4], %s570
          %s572 = sand.u32 %s101, 1
          %s573 = smul.addr %s572, 4
          %s574 = scalar_lea.vmem [#allocation7], %s573
          %575 = dma.done %s571, 64
        $region48: #{tpu_custom_call.1} parent=43 // pred_fallthru
          _
      $region44: #{tpu_custom_call.1} parent=5 // pred_fallthru
        _
    $region6: #{tpu_custom_call.1} parent=1 // loop_footer
      %s21 = sadd.s32 1, %s17
    $region7: #{tpu_custom_call.1} parent=1 // loop_footer_branch
      %16 = sbr.rel target = $region3
    $region8: #{tpu_custom_call.1} parent=1 // loop_exit
      _
    %576 = vsyncpa [#allocation3], 1
    %s577 = scalar_lea.sflag [#allocation3], 1
    %578 = vsyncpa %s577, 1
    %579 = vsyncpa [#allocation6], 1
    %s580 = scalar_lea.sflag [#allocation6], 1
    %581 = vsyncpa %s580, 1
    %582 = vsyncpa [#allocation4], 1
    %s583 = scalar_lea.sflag [#allocation4], 1
    %584 = vsyncpa %s583, 1

</llo_original>
